<compile_context>
chip_gen: v7x
topology: tpu7x:2x2x1
jax: 0.10.0
libtpu: 0.0.40
codegen_flags: <defaults>
</compile_context>

<pallas_src>
import numpy as np
import jax
import jax.numpy as jnp
from jax import lax
from jax.experimental import pallas as pl
from jax.experimental.pallas import tpu as pltpu


_A = -0.75  # PyTorch bicubic convolution constant (Keys cubic).


def _cubic_coeffs(t):
    """4-tap Keys cubic coefficients (PyTorch A=-0.75) for fractional t in [0,1)."""
    A = _A
    tp1 = t + 1.0
    omt = 1.0 - t
    tmt = 2.0 - t
    w0 = ((A * tp1 - 5.0 * A) * tp1 + 8.0 * A) * tp1 - 4.0 * A   # cubic2(t+1)
    w1 = ((A + 2.0) * t - (A + 3.0)) * t * t + 1.0               # cubic1(t)
    w2 = ((A + 2.0) * omt - (A + 3.0)) * omt * omt + 1.0         # cubic1(1-t)
    w3 = ((A * tmt - 5.0 * A) * tmt + 8.0 * A) * tmt - 4.0 * A   # cubic2(2-t)
    return np.stack([w0, w1, w2, w3], axis=-1)


def _bicubic_weight_matrix(in_size, out_size):
    """Dense (out_size, in_size) 1-D bicubic interpolation matrix.

    align_corners=False coordinate mapping (src = (dst+0.5)*scale - 0.5) and
    border-replicate clamping of the 4 tap indices, as in PyTorch's bicubic
    kernel (antialias=False).
    """
    scale = in_size / out_size
    dst = np.arange(out_size, dtype=np.float64)
    src = (dst + 0.5) * scale - 0.5
    i0 = np.floor(src).astype(np.int64)
    t = src - i0
    coeffs = _cubic_coeffs(t)                                   # (out_size, 4)
    w = np.zeros((out_size, in_size), dtype=np.float64)
    rows = np.arange(out_size)
    for k in range(4):
        idx = np.clip(i0 - 1 + k, 0, in_size - 1)
        np.add.at(w, (rows, idx), coeffs[:, k])                 # clamped taps add up
    return w.astype(np.float32)


def _make_resize_kernel(C, H_in, W_in, out_h, out_w, h_blk, mxu_dtype):
    """Build the kernel body for one (sample, input-row-block) grid step."""
    mask_rows = (H_in % h_blk) != 0  # only traced if the last row block is partial

    def kernel(x_ref, whk_ref, wwt_ref, o_ref, acc_ref):
        # x_ref  : (1, C, h_blk, W_in)        input row block, all channels
        # whk_ref: (1, C*out_h, C*h_blk)      block-diagonal kron(I_C, Wh_k)
        # wwt_ref: (W_in, out_w)              width-pass weights (pre-transposed)
        # o_ref  : (1, C, out_h, out_w)
        # acc_ref: (C*out_h, out_w) f32       persistent accumulator (scratch)
        k = pl.program_id(1)

        @pl.when(k == 0)
        def _init():
            acc_ref[...] = jnp.zeros_like(acc_ref)

        x_blk = x_ref[0]                                       # (C, h_blk, W_in)
        if mask_rows:
            # Zero out-of-range rows of a partial edge block (their weights are
            # already zero; this only guards against NaN garbage in the pad).
            valid = H_in - k * h_blk
            rows = lax.broadcasted_iota(jnp.int32, (1, h_blk, 1), 1)
            x_blk = jnp.where(rows < valid, x_blk, jnp.zeros_like(x_blk))

        # ---- fused width pass: one (C*h_blk, W_in) @ (W_in, out_w) MXU matmul
        x2 = x_blk.reshape(C * h_blk, W_in).astype(mxu_dtype)
        tmp = jnp.dot(x2, wwt_ref[...], preferred_element_type=jnp.float32)

        # ---- fused height pass: one block-diagonal matmul, accumulated over
        #      input-row blocks; rows of the result are already (c, out_h) ordered.
        acc_ref[...] += jnp.dot(whk_ref[0], tmp.astype(mxu_dtype),
                                preferred_element_type=jnp.float32)

        @pl.when(k == pl.num_programs(1) - 1)
        def _store():
            o_ref[0] = acc_ref[...].reshape(C, out_h, out_w).astype(o_ref.dtype)

    return kernel


def _pick_row_block(C, H, W, itemsize, target_bytes=4 * 1024 * 1024):
    """Largest multiple-of-8 row block keeping one input block ~<= 4 MiB."""
    if C * H * W * itemsize <= target_bytes:
        return H
    rows = (target_bytes // max(1, C * W * itemsize)) // 8 * 8
    return int(max(8, min(rows, H)))


def resize_pallas(x, size, *, use_bf16_mxu=None):
    """PyTorch-style Resize: x is (B, C, H, W) or (C, H, W); `size` is an int."""
    if not isinstance(size, int):
        raise ValueError("Resize: only integer `size` is supported (as in the module).")

    squeeze = False
    if x.ndim == 3:
        x = x[None]
        squeeze = True
    elif x.ndim != 4:
        raise ValueError(f"Invalid input shape: {x.shape}")

    B, C, H, W = x.shape
    if min(H, W) == size:                      # module's early return (pre-unsqueeze)
        return x[0] if squeeze else x
    if H > W:                                   # mirror the module's float-expression order
        ratio = H / W
        out_h, out_w = int(size * ratio), size
    else:
        ratio = W / H
        out_h, out_w = size, int(size * ratio)

    # MXU operand dtype (review opt #6): default keeps PyTorch-f32 fidelity.
    if use_bf16_mxu is None:
        use_bf16_mxu = (x.dtype == jnp.bfloat16)
    mxu_dtype = jnp.bfloat16 if use_bf16_mxu else jnp.float32
    x_k = x
    if use_bf16_mxu and x.dtype == jnp.float32:
        x_k = x.astype(jnp.bfloat16)           # halves input HBM bytes; ~1e-2 accuracy

    # Input-row blocking (review opts #3/#4): bound per-step VMEM at real sizes.
    h_blk = _pick_row_block(C, H, W, x_k.dtype.itemsize)
    num_hblk = -(-H // h_blk)
    h_pad = num_hblk * h_blk

    # Height-pass weights, zero-padded to h_pad columns and expanded per block
    # into block-diagonal kron(I_C, Wh_k) so the H pass is one 2-D matmul.
    wh = _bicubic_weight_matrix(H, out_h)                       # (out_h, H)
    if h_pad != H:
        wh = np.concatenate([wh, np.zeros((out_h, h_pad - H), np.float32)], axis=1)
    eye_c = np.eye(C, dtype=np.float32)
    whk = np.stack([np.kron(eye_c, wh[:, k * h_blk:(k + 1) * h_blk])
                    for k in range(num_hblk)])                  # (num_hblk, C*out_h, C*h_blk)
    wwt = _bicubic_weight_matrix(W, out_w).T                    # (W, out_w)

    whk = jnp.asarray(whk, dtype=mxu_dtype)
    wwt = jnp.asarray(wwt, dtype=mxu_dtype)

    # Explicit VMEM budget (review opts #4/#9): working-set estimate with
    # double-buffered blocks, kept well under v7x's 64 MiB physical VMEM and
    # above v5e's 16 MiB default scoped limit.
    isz = x_k.dtype.itemsize
    wsz = jnp.dtype(mxu_dtype).itemsize
    osz = x.dtype.itemsize
    vmem_est = (2 * (C * h_blk * W * isz
                     + C * out_h * C * h_blk * wsz
                     + W * out_w * wsz
                     + C * out_h * out_w * osz)
                + C * out_h * out_w * 4)
    vmem_limit = int(min(56 * 1024 * 1024, max(32 * 1024 * 1024, 2 * vmem_est)))

    kernel = _make_resize_kernel(C, H, W, out_h, out_w, h_blk, mxu_dtype)

    out = pl.pallas_call(
        kernel,
        out_shape=jax.ShapeDtypeStruct((B, C, out_h, out_w), x.dtype),
        grid_spec=pltpu.PrefetchScalarGridSpec(
            num_scalar_prefetch=0,
            grid=(B, num_hblk),                 # reduction (row blocks) is the last axis
            in_specs=[
                # One (C, h_blk, W) input row band per step: every input element
                # is DMA'd from HBM exactly once, auto double-buffered.
                pl.BlockSpec((1, C, h_blk, W), lambda b, k: (b, 0, k, 0)),
                # Block-diagonal height-pass weights for row block k.
                pl.BlockSpec((1, C * out_h, C * h_blk), lambda b, k: (k, 0, 0)),
                # Width-pass weights: same block every step (no re-DMA cost).
                pl.BlockSpec((W, out_w), lambda b, k: (0, 0)),
            ],
            out_specs=pl.BlockSpec((1, C, out_h, out_w), lambda b, k: (b, 0, 0, 0)),
            scratch_shapes=[pltpu.VMEM((C * out_h, out_w), jnp.float32)],
        ),
        compiler_params=pltpu.CompilerParams(
            # Samples are independent (megacore-shardable on v7x); row blocks
            # are a reduction.  With B == 1 a second parallel axis over channel
            # tiles would engage both v7x cores without duplicating input reads.
            dimension_semantics=("parallel", "arbitrary"),
            vmem_limit_bytes=vmem_limit,
        ),
    )(x_k, whk, wwt)

    # Module uses `.squeeze()` (all unit dims) on the 3-D path.
    return jnp.squeeze(out) if squeeze else out


def resize_ref(x_np, out_h, out_w):
    """Independent per-pixel gather-based bicubic reference (PyTorch rules)."""
    x_np = np.asarray(x_np, dtype=np.float64)
    B, C, H, W = x_np.shape

    def taps(in_size, out_size):
        scale = in_size / out_size
        src = (np.arange(out_size, dtype=np.float64) + 0.5) * scale - 0.5
        i0 = np.floor(src).astype(np.int64)
        t = src - i0
        co = _cubic_coeffs(t)                                    # (out, 4)
        idx = np.clip(i0[:, None] - 1 + np.arange(4)[None, :], 0, in_size - 1)
        return idx, co

    hi, hc = taps(H, out_h)
    wi, wc = taps(W, out_w)
    out = np.zeros((B, C, out_h, out_w), dtype=np.float64)
    for i in range(out_h):
        for j in range(out_w):
            patch = x_np[:, :, hi[i]][:, :, :, wi[j]]            # (B, C, 4, 4)
            wgt = hc[i][:, None] * wc[j][None, :]                # (4, 4)
            out[:, :, i, j] = np.sum(patch * wgt, axis=(2, 3))
    return out.astype(np.float32)


if __name__ == "__main__":
    B, C, H, W = 2, 4, 16, 16
    size = 8  # short side 16 -> 8, so 16x16 -> 8x8 bicubic resize

    key = jax.random.PRNGKey(0)
    x = jax.random.normal(key, (B, C, H, W), dtype=jnp.float32)

    out = resize_pallas(x, size)
    out = jax.block_until_ready(out)

    ref = resize_ref(np.asarray(x), 8, 8)
    assert out.shape == (B, C, 8, 8) and out.dtype == x.dtype
    assert np.allclose(np.asarray(out), ref, atol=2e-4, rtol=2e-4)

    print("KERNEL_OK")
</pallas_src>

<mosaic_0001>
module attributes {stable_mosaic.version = 11 : i64} {
  func.func @kernel(%arg0: i32, %arg1: i32, %arg2: memref<1x4x16x16xf32, #tpu.memory_space<vmem>>, %arg3: memref<1x32x64xf32, #tpu.memory_space<vmem>>, %arg4: memref<16x8xf32, #tpu.memory_space<vmem>>, %arg5: memref<1x4x8x8xf32, #tpu.memory_space<vmem>>, %arg6: memref<32x8xf32, #tpu.memory_space<vmem>>) attributes {dimension_semantics = [#tpu.dimension_semantics<parallel>, #tpu.dimension_semantics<arbitrary>], iteration_bounds = array<i64: 2, 1>, scalar_prefetch = 0 : i64, scratch_operands = 1 : i64, tpu.core_type = #tpu.core_type<tc>, window_params = [{transform_indices = @transform_0, window_bounds = array<i64: 1, 4, 16, 16>}, {transform_indices = @transform_1, window_bounds = array<i64: 1, 32, 64>}, {pipeline_mode = #tpu.pipeline_mode<synchronous>, transform_indices = @transform_2, window_bounds = array<i64: 16, 8>}, {transform_indices = @transform_3, window_bounds = array<i64: 1, 4, 8, 8>}]} {
    %c0_i32 = arith.constant 0 : i32
    %0 = arith.cmpi eq, %arg1, %c0_i32 : i32
    %1 = arith.extui %0 : i1 to i32
    %c0_i32_0 = arith.constant 0 : i32
    %2 = arith.cmpi ne, %1, %c0_i32_0 : i32
    scf.if %2 {
      %cst_16 = arith.constant 0.000000e+00 : f32
      %17 = vector.broadcast %cst_16 : f32 to vector<32x8xf32>
      %c0_17 = arith.constant 0 : index
      %c0_18 = arith.constant 0 : index
      %18 = vector.load %arg6[%c0_17, %c0_18] : memref<32x8xf32, #tpu.memory_space<vmem>>, vector<32x8xf32>
      tpu.vector_store %arg6[%c0_17, %c0_18], %17 {strides = array<i32>} : memref<32x8xf32, #tpu.memory_space<vmem>>, vector<32x8xf32>,
    } else {
    }
    %c0 = arith.constant 0 : index
    %c0_1 = arith.constant 0 : index
    %c0_2 = arith.constant 0 : index
    %c0_3 = arith.constant 0 : index
    %3 = vector.load %arg2[%c0, %c0_1, %c0_2, %c0_3] : memref<1x4x16x16xf32, #tpu.memory_space<vmem>>, vector<1x4x16x16xf32>
    %4 = vector.shape_cast %3 : vector<1x4x16x16xf32> to vector<4x16x16xf32>
    %5 = vector.shape_cast %4 : vector<4x16x16xf32> to vector<64x16xf32>
    %c0_4 = arith.constant 0 : index
    %c0_5 = arith.constant 0 : index
    %6 = vector.load %arg4[%c0_4, %c0_5] : memref<16x8xf32, #tpu.memory_space<vmem>>, vector<16x8xf32>
    %cst = arith.constant dense<0.000000e+00> : vector<64x8xf32>
    %7 = tpu.matmul %5, %6, %cst {dimension_numbers = #tpu.dot_dimension_numbers<[1], [0], [0], [1], [0, 0, 1, 1], [], []>} : vector<64x16xf32>, vector<16x8xf32>, vector<64x8xf32> -> vector<64x8xf32>
    %c0_6 = arith.constant 0 : index
    %c0_7 = arith.constant 0 : index
    %8 = vector.load %arg6[%c0_6, %c0_7] : memref<32x8xf32, #tpu.memory_space<vmem>>, vector<32x8xf32>
    %c0_8 = arith.constant 0 : index
    %c0_9 = arith.constant 0 : index
    %c0_10 = arith.constant 0 : index
    %9 = vector.load %arg3[%c0_8, %c0_9, %c0_10] : memref<1x32x64xf32, #tpu.memory_space<vmem>>, vector<1x32x64xf32>
    %10 = vector.shape_cast %9 : vector<1x32x64xf32> to vector<32x64xf32>
    %cst_11 = arith.constant dense<0.000000e+00> : vector<32x8xf32>
    %11 = tpu.matmul %10, %7, %cst_11 {dimension_numbers = #tpu.dot_dimension_numbers<[1], [0], [0], [1], [0, 0, 1, 1], [], []>} : vector<32x64xf32>, vector<64x8xf32>, vector<32x8xf32> -> vector<32x8xf32>
    %12 = arith.addf %8, %11 : vector<32x8xf32>
    %c0_12 = arith.constant 0 : index
    %c0_13 = arith.constant 0 : index
    %13 = vector.load %arg6[%c0_12, %c0_13] : memref<32x8xf32, #tpu.memory_space<vmem>>, vector<32x8xf32>
    tpu.vector_store %arg6[%c0_12, %c0_13], %12 {strides = array<i32>} : memref<32x8xf32, #tpu.memory_space<vmem>>, vector<32x8xf32>,
    %c0_i32_14 = arith.constant 0 : i32
    %14 = arith.cmpi eq, %arg1, %c0_i32_14 : i32
    %15 = arith.extui %14 : i1 to i32
    %c0_i32_15 = arith.constant 0 : i32
    %16 = arith.cmpi ne, %15, %c0_i32_15 : i32
    scf.if %16 {
      %c0_16 = arith.constant 0 : index
      %c0_17 = arith.constant 0 : index
      %17 = vector.load %arg6[%c0_16, %c0_17] : memref<32x8xf32, #tpu.memory_space<vmem>>, vector<32x8xf32>
      %18 = vector.shape_cast %17 : vector<32x8xf32> to vector<4x8x8xf32>
      %c0_18 = arith.constant 0 : index
      %c0_19 = arith.constant 0 : index
      %c0_20 = arith.constant 0 : index
      %c0_21 = arith.constant 0 : index
      %19 = vector.load %arg5[%c0_18, %c0_19, %c0_20, %c0_21] : memref<1x4x8x8xf32, #tpu.memory_space<vmem>>, vector<1x4x8x8xf32>
      %20 = vector.shape_cast %19 : vector<1x4x8x8xf32> to vector<4x8x8xf32>
      %21 = vector.shape_cast %18 : vector<4x8x8xf32> to vector<1x4x8x8xf32>
      tpu.vector_store %arg5[%c0_18, %c0_19, %c0_20, %c0_21], %21 {strides = array<i32>} : memref<1x4x8x8xf32, #tpu.memory_space<vmem>>, vector<1x4x8x8xf32>,
    } else {
    }
    return
  }
  func.func @transform_0(%arg0: i32, %arg1: i32) -> (i32, i32, i32, i32) {
    %c0_i32 = arith.constant 0 : i32
    %c0_i32_0 = arith.constant 0 : i32
    %c0_i32_1 = arith.constant 0 : i32
    return %arg0, %c0_i32, %arg1, %c0_i32_0 : i32, i32, i32, i32
  }
  func.func @transform_1(%arg0: i32, %arg1: i32) -> (i32, i32, i32) {
    %c0_i32 = arith.constant 0 : i32
    %c0_i32_0 = arith.constant 0 : i32
    %c0_i32_1 = arith.constant 0 : i32
    return %arg1, %c0_i32, %c0_i32_0 : i32, i32, i32
  }
  func.func @transform_2(%arg0: i32, %arg1: i32) -> (i32, i32) {
    %c0_i32 = arith.constant 0 : i32
    %c0_i32_0 = arith.constant 0 : i32
    %c0_i32_1 = arith.constant 0 : i32
    return %c0_i32, %c0_i32_0 : i32, i32
  }
  func.func @transform_3(%arg0: i32, %arg1: i32) -> (i32, i32, i32, i32) {
    %c0_i32 = arith.constant 0 : i32
    %c0_i32_0 = arith.constant 0 : i32
    %c0_i32_1 = arith.constant 0 : i32
    %c0_i32_2 = arith.constant 0 : i32
    return %arg0, %c0_i32, %c0_i32_0, %c0_i32_1 : i32, i32, i32, i32
  }
}

</mosaic_0001>

<llo_original>
// kernel: tpu_custom_call.1
$region0: #{tpu_custom_call.1}
  #allocation0 [shape = 'u32[]', space=smem, size = 0x4, offset = 0x4, fixed_abs, tag = 'smem constant byte address 0x4 - core index']
  #allocation1 [shape = 'u32[144,128]{1,0:T(1,128)}', space=vmem, size = 0x12000, scoped, tag = 'internal scratch']
  #allocation2 [shape = 'f32[32,8]{1,0:T(8,128)}', space=vmem, size = 0x4000, scoped, tag = 'scratch operand']
  %s0 = inlined_call_operand.hbm [shape: f32[2,4,16,16], index: 0, kind: input, shape index: {}]
  %s1 = inlined_call_operand.hbm [shape: f32[1,32,64], index: 1, kind: input, shape index: {}]
  %s2 = inlined_call_operand.vmem [shape: f32[16,8], index: 2, kind: input, shape index: {}]
  %s3 = inlined_call_operand.hbm [shape: f32[2,4,8,8], index: 3, kind: output, shape index: {}]
  %s4 = sld [smem:[#allocation0]]
  $region61: #{tpu_custom_call.1} parent=0
    _
  %s6 = ssub.s32 1, %s4
  %s7 = scalar_select 0, %s6, %s4
  $region1: #{tpu_custom_call.1} parent=0
    #allocation3 [shape = 'u8[65536]{0}', space=vmem, size = 0x10000, scoped, tag = 'input window, operand 0']
    #allocation4 [shape = 's32[2]{0}', space=sflag, size = 0x8, scoped, tag = 'scoped memory for tpu_custom_call.1']
    #allocation5 [shape = 's32[2]{0}', space=sflag, size = 0x8, scoped, tag = 'scoped memory for tpu_custom_call.1']
    #allocation6 [shape = 'u8[16384]{0}', space=vmem, size = 0x4000, scoped, tag = 'input window, operand 1, single buffered']
    #allocation7 [shape = 's32[1]{0}', space=sflag, size = 0x4, scoped, tag = 'scoped memory for tpu_custom_call.1']
    #allocation8 [shape = 'u8[32768]{0}', space=vmem, size = 0x8000, scoped, tag = 'output window, operand 0']
    %8 = vsyncpa [#allocation4], 0
    %s9 = scalar_lea.sflag [#allocation4], 1
    %10 = vsyncpa %s9, 0
    %11 = vsyncpa [#allocation7], 0
    %12 = vsyncpa [#allocation5], 0
    %s13 = scalar_lea.sflag [#allocation5], 1
    %14 = vsyncpa %s13, 0
    loop: start=0, step=1, limit=4
    $region2: #{tpu_custom_call.1} parent=1 // loop_pre_header
      _
    $region3: #{tpu_custom_call.1} parent=1 // loop_header
      %s16 = sphi 0, %s20
      %p17 = scmp.ge.s32.totalorder %s16, 4
      %s23 = sphi 0, %s35
      %s24 = sphi 0, %s31
      %s25 = sphi 0, %s23
      %s26 = sphi 0, %s24
      %s27 = sphi 0, %s25
      %s28 = sphi 0, %s26
      %s40 = sphi 0, %s42
      %s43 = sphi 0, %s40
      %s44 = sphi 0, %s43
      %s60 = sphi 0, %s44
      %s66 = sphi 0, %s68
      %s69 = sphi 0, %s66
      %s70 = sphi 0, %s69
      %s86 = sphi 0, %s70
      %s90 = sphi 0, %s90
      %s92 = sphi 0, %s90
      %s93 = sphi 0, %s92
      %s107 = sphi 0, %s93
      %s113 = sphi 0, %s115
      %s116 = sphi 0, %s113
      %s117 = sphi 0, %s116
      %s133 = sphi 0, %s117
    $region4: #{tpu_custom_call.1} parent=1 // loop_header_branch
      %19 = sbr.rel (%p17) target = $region8
    $region5: #{tpu_custom_call.1} parent=1 // loop_body
      %s21 = ssub.s32 %s16, 1
      %s22 = ssub.s32 %s16, 2
      %s29 = sadd.s32 1, %s24
      %p30 = scmp.ge.s32.totalorder %s29, 1
      %s31 = scalar_select %p30, 0, %s29
      %s32 = sadd.s32 1, %s23
      %s33 = scalar_select %p30, %s32, %s23
      %p34 = scmp.ge.s32.totalorder %s33, 2
      %s35 = scalar_select %p34, 0, %s33
      %s36 = ssub.s32 %s23, %s35
      %s37 = ssub.s32 %s24, %s31
      %s38 = sor.u32 %s36, %s37
      %p39 = scmp.eq.s32.totalorder %s38, 0
      %s41 = sadd.s32 %s40, 1
      %s42 = scalar_select %p39, %s40, %s41
      %p45 = pneg %p39
      %p46 = scmp.eq.s32.totalorder %s16, 1
      %p47 = por %p45, %p46
      %p48 = scmp.ne.s32.totalorder %s40, %s43
      %p49 = scmp.eq.s32.totalorder %s16, 0
      %p50 = por %p48, %p49
      %p51 = scmp.ne.s32.totalorder %s40, %s43
      %p52 = scmp.eq.s32.totalorder %s21, 1
      %p53 = por %p51, %p52
      %p54 = scmp.ne.s32.totalorder %s43, %s44
      %p55 = scmp.eq.s32.totalorder %s21, 0
      %p56 = por %p54, %p55
      %p57 = scmp.ne.s32.totalorder %s43, %s44
      %p58 = scmp.eq.s32.totalorder %s22, 1
      %p59 = por %p57, %p58
      %p61 = scmp.ne.s32.totalorder %s44, %s60
      %p62 = scmp.eq.s32.totalorder %s22, 0
      %p63 = por %p61, %p62
      %s64 = ssub.s32 %s24, %s31
      %p65 = scmp.eq.s32.totalorder %s64, 0
      %s67 = sadd.s32 %s66, 1
      %s68 = scalar_select %p65, %s66, %s67
      %p71 = pneg %p65
      %p72 = scmp.eq.s32.totalorder %s16, 1
      %p73 = por %p71, %p72
      %p74 = scmp.ne.s32.totalorder %s66, %s69
      %p75 = scmp.eq.s32.totalorder %s16, 0
      %p76 = por %p74, %p75
      %p77 = scmp.ne.s32.totalorder %s66, %s69
      %p78 = scmp.eq.s32.totalorder %s21, 1
      %p79 = por %p77, %p78
      %p80 = scmp.ne.s32.totalorder %s69, %s70
      %p81 = scmp.eq.s32.totalorder %s21, 0
      %p82 = por %p80, %p81
      %p83 = scmp.ne.s32.totalorder %s69, %s70
      %p84 = scmp.eq.s32.totalorder %s22, 1
      %p85 = por %p83, %p84
      %p87 = scmp.ne.s32.totalorder %s70, %s86
      %p88 = scmp.eq.s32.totalorder %s22, 0
      %p89 = por %p87, %p88
      %s91 = sadd.s32 %s90, 1
      %p94 = scmp.eq.s32.totalorder %s16, 1
      %p95 = scmp.ne.s32.totalorder %s90, %s92
      %p96 = scmp.eq.s32.totalorder %s16, 0
      %p97 = por %p95, %p96
      %p98 = scmp.ne.s32.totalorder %s90, %s92
      %p99 = scmp.eq.s32.totalorder %s21, 1
      %p100 = por %p98, %p99
      %p101 = scmp.ne.s32.totalorder %s92, %s93
      %p102 = scmp.eq.s32.totalorder %s21, 0
      %p103 = por %p101, %p102
      %p104 = scmp.ne.s32.totalorder %s92, %s93
      %p105 = scmp.eq.s32.totalorder %s22, 1
      %p106 = por %p104, %p105
      %p108 = scmp.ne.s32.totalorder %s93, %s107
      %p109 = scmp.eq.s32.totalorder %s22, 0
      %p110 = por %p108, %p109
      %s111 = ssub.s32 %s23, %s35
      %p112 = scmp.eq.s32.totalorder %s111, 0
      %s114 = sadd.s32 %s113, 1
      %s115 = scalar_select %p112, %s113, %s114
      %p118 = pneg %p112
      %p119 = scmp.eq.s32.totalorder %s16, 1
      %p120 = por %p118, %p119
      %p121 = scmp.ne.s32.totalorder %s113, %s116
      %p122 = scmp.eq.s32.totalorder %s16, 0
      %p123 = por %p121, %p122
      %p124 = scmp.ne.s32.totalorder %s113, %s116
      %p125 = scmp.eq.s32.totalorder %s21, 1
      %p126 = por %p124, %p125
      %p127 = scmp.ne.s32.totalorder %s116, %s117
      %p128 = scmp.eq.s32.totalorder %s21, 0
      %p129 = por %p127, %p128
      %p130 = scmp.ne.s32.totalorder %s116, %s117
      %p131 = scmp.eq.s32.totalorder %s22, 1
      %p132 = por %p130, %p131
      %p134 = scmp.ne.s32.totalorder %s117, %s133
      %p135 = scmp.eq.s32.totalorder %s22, 0
      %p136 = por %p134, %p135
      %p137 = scmp.le.s32.totalorder 1, %s16
      %p138 = scmp.lt.s32.totalorder %s16, 3
      %p139 = pnand %p137, %p138
      %p140 = pneg %p139
      // Predicated region
      $region9: #{tpu_custom_call.1} parent=5 // pred_check
        _
      $region10: #{tpu_custom_call.1} parent=5 // pred_check_branch
        %142 = sbr.rel (%p139) target = $region12
      $region11: #{tpu_custom_call.1} parent=5 // pred_region
        %s143 = ssub.s32 %s16, 1
        // Predicated region
        $region13: #{tpu_custom_call.1} parent=11 // pred_check
          %p144 = pneg %p82
        $region14: #{tpu_custom_call.1} parent=11 // pred_check_branch
          %146 = sbr.rel (%p144) target = $region16
        $region15: #{tpu_custom_call.1} parent=11 // pred_region
          %s148 = ssub.s32 512, 512
          %149 = vsyncadd [#allocation7], %s148
          %s150 = smul.addr %s26, 4
          %s151 = smul.addr %s150, 128
          %s152 = scalar_lea.hbm %s1, %s151
          %s153 = sshll.u32 [#allocation6], 4
          %s154 = int_to_ptr.vmem [resolvable:$true] %s153
          %159 = dma.hbm_to_vmem [thread:$0]  %s152, 512, %s154, [#allocation7], 128, 128, 8
        $region16: #{tpu_custom_call.1} parent=11 // pred_fallthru
          _
        // Predicated region
        $region17: #{tpu_custom_call.1} parent=11 // pred_check
          %p160 = pneg %p103
        $region18: #{tpu_custom_call.1} parent=11 // pred_check_branch
          %162 = sbr.rel (%p160) target = $region20
        $region19: #{tpu_custom_call.1} parent=11 // pred_region
          _
        $region20: #{tpu_custom_call.1} parent=11 // pred_fallthru
          _
      $region12: #{tpu_custom_call.1} parent=5 // pred_fallthru
        _
      %p163 = scmp.lt.s32.totalorder %s16, 2
      // Predicated region
      $region21: #{tpu_custom_call.1} parent=5 // pred_check
        %p164 = pneg %p163
      $region22: #{tpu_custom_call.1} parent=5 // pred_check_branch
        %166 = sbr.rel (%p164) target = $region24
      $region23: #{tpu_custom_call.1} parent=5 // pred_region
        // Predicated region
        $region25: #{tpu_custom_call.1} parent=23 // pred_check
          %p167 = pneg %p50
        $region26: #{tpu_custom_call.1} parent=23 // pred_check_branch
          %169 = sbr.rel (%p167) target = $region28
        $region27: #{tpu_custom_call.1} parent=23 // pred_region
          %s170 = sand.u32 %s40, 1
          %s171 = scalar_lea.sflag [#allocation4], %s170
          %s172 = sand.u32 %s40, 1
          %s173 = smul.addr %s172, 64
          %s174 = scalar_lea.vmem [#allocation3], %s173
          %s175 = smul.u32 2, %s24
          %s177 = ssub.s32 1024, 1024
          %178 = vsyncadd %s171, %s177
          %s179 = smul.addr %s23, 8
          %s180 = sadd.s32 %s175, %s179
          %s181 = smul.addr %s180, 128
          %s182 = scalar_lea.hbm %s0, %s181
          %s183 = sshll.u32 %s174, 4
          %s184 = int_to_ptr.vmem [resolvable:$true] %s183
          %189 = dma.hbm_to_vmem [thread:$0]  %s182, 1024, %s184, %s171, 128, 128, 8
        $region28: #{tpu_custom_call.1} parent=23 // pred_fallthru
          _
      $region24: #{tpu_custom_call.1} parent=5 // pred_fallthru
        _
      %p190 = scmp.le.s32.totalorder 1, %s16
      %p191 = scmp.lt.s32.totalorder %s16, 3
      %p192 = pnand %p190, %p191
      %p193 = pneg %p192
      // Predicated region
      $region29: #{tpu_custom_call.1} parent=5 // pred_check
        _
      $region30: #{tpu_custom_call.1} parent=5 // pred_check_branch
        %195 = sbr.rel (%p192) target = $region32
      $region31: #{tpu_custom_call.1} parent=5 // pred_region
        %s196 = ssub.s32 %s16, 1
        %s197 = sand.u32 %s43, 1
        %s198 = scalar_lea.sflag [#allocation4], %s197
        %s199 = sand.u32 %s43, 1
        %s200 = smul.addr %s199, 64
        %s201 = scalar_lea.vmem [#allocation3], %s200
        // Predicated region
        $region33: #{tpu_custom_call.1} parent=31 // pred_check
          %p202 = pneg %p56
        $region34: #{tpu_custom_call.1} parent=31 // pred_check_branch
          %204 = sbr.rel (%p202) target = $region36
        $region35: #{tpu_custom_call.1} parent=31 // pred_region
          %205 = dma.done %s198, 1024
        $region36: #{tpu_custom_call.1} parent=31 // pred_fallthru
          _
        // Predicated region
        $region37: #{tpu_custom_call.1} parent=31 // pred_check
          %p206 = pneg %p82
        $region38: #{tpu_custom_call.1} parent=31 // pred_check_branch
          %208 = sbr.rel (%p206) target = $region40
        $region39: #{tpu_custom_call.1} parent=31 // pred_region
          %209 = dma.done [#allocation7], 512
        $region40: #{tpu_custom_call.1} parent=31 // pred_fallthru
          _
        %s210 = sand.u32 %s43, 1
        %s211 = scalar_lea.sflag [#allocation4], %s210
        %s212 = sand.u32 %s43, 1
        %s213 = smul.addr %s212, 64
        %s214 = scalar_lea.vmem [#allocation3], %s213
        %p215 = pneg %p56
        %p216 = pneg %p53
        %p217 = pneg %p82
        %p218 = pneg %p79
        %p219 = pneg %p103
        %p220 = pneg %p100
        %p221 = pneg %p129
        %p222 = pneg %p126
        %s223 = sand.u32 %s116, 1
        %s224 = scalar_lea.sflag [#allocation5], %s223
        %s225 = sand.u32 %s116, 1
        %s226 = smul.addr %s225, 32
        %s227 = scalar_lea.vmem [#allocation8], %s226
        %s228 = smul.u32 2, %s26
        %p229 = scmp.eq.s32.totalorder %s26, 0
        // Predicated region
        $region41: #{tpu_custom_call.1} parent=31 // pred_check
          %p230 = pneg %p229
        $region42: #{tpu_custom_call.1} parent=31 // pred_check_branch
          %232 = sbr.rel (%p230) target = $region44
        $region43: #{tpu_custom_call.1} parent=31 // pred_region
          %vm233 = vcmask 64512
          %234 = vst.msk [vmem:[#allocation2] sm:$0xff] %vm233, 0.0
          %235 = vst.msk [vmem:[#allocation2 + $0x8] sm:$0xff] %vm233, 0.0
          %236 = vst.msk [vmem:[#allocation2 + $0x10] sm:$0xff] %vm233, 0.0
          %237 = vst.msk [vmem:[#allocation2 + $0x18] sm:$0xff] %vm233, 0.0
        $region44: #{tpu_custom_call.1} parent=31 // pred_fallthru
          _
        %v238 = vld [vmem:[%s201] sm:$0xff]
        %v239 = vld [vmem:[%s201 + $0x8] sm:$0xff]
        %v240 = vld [vmem:[%s201 + $0x10] sm:$0xff]
        %v241 = vld [vmem:[%s201 + $0x18] sm:$0xff]
        %v242 = vld [vmem:[%s201 + $0x20] sm:$0xff]
        %v243 = vld [vmem:[%s201 + $0x28] sm:$0xff]
        %v244 = vld [vmem:[%s201 + $0x30] sm:$0xff]
        %v245 = vld [vmem:[%s201 + $0x38] sm:$0xff]
        %v246 = vld [vmem:[%s2] sm:$0xff]
        %v247 = vld [vmem:[%s2 + $0x8] sm:$0xff]
        %vm248 = vcmask 130048
        %v250 = vsel %vm248, %v238, 0
        %v253 = vsel %vm248, %v239, 0
        %v256 = vsel %vm248, %v240, 0
        %v259 = vsel %vm248, %v241, 0
        %v262 = vsel %vm248, %v242, 0
        %v265 = vsel %vm248, %v243, 0
        %v268 = vsel %vm248, %v244, 0
        %v271 = vsel %vm248, %v245, 0
        %273 = vmatprep.subr.mxu0 0.0
        %274 = vmatpush1.msra.mxu0 %v246
        %275 = vmatprep.subr.mxu0 0.0
        %276 = vmatpush1.msra.mxu0 %v247
        %277 = vmatprep.subr.mxu0 0.0
        %278 = vmatpush1.msra.mxu0 0.0
        %279 = vmatprep.subr.mxu0 0.0
        %280 = vmatpush1.msra.mxu0 0.0
        %281 = vmatprep.subr.mxu0 0.0
        %282 = vmatpush1.msra.mxu0 0.0
        %283 = vmatprep.subr.mxu0 0.0
        %284 = vmatpush1.msra.mxu0 0.0
        %285 = vmatprep.subr.mxu0 0.0
        %286 = vmatpush1.msra.mxu0 0.0
        %287 = vmatprep.subr.mxu0 0.0
        %288 = vmatpush1.msra.mxu0 0.0
        %289 = vmatprep.subr.mxu0 0.0
        %290 = vmatpush1.msra.mxu0 0.0
        %291 = vmatprep.subr.mxu0 0.0
        %292 = vmatpush1.msra.mxu0 0.0
        %293 = vmatprep.subr.mxu0 0.0
        %294 = vmatpush1.msra.mxu0 0.0
        %295 = vmatprep.subr.mxu0 0.0
        %296 = vmatpush1.msra.mxu0 0.0
        %297 = vmatprep.subr.mxu0 0.0
        %298 = vmatpush1.msra.mxu0 0.0
        %299 = vmatprep.subr.mxu0 0.0
        %300 = vmatpush1.msra.mxu0 0.0
        %301 = vmatprep.subr.mxu0 0.0
        %302 = vmatpush1.msra.mxu0 0.0
        %303 = vmatprep.subr.mxu0 0.0
        %304 = vmatpush1.msra.mxu0 0.0
        %305 = vmatprep.subr.mxu0 0.0
        %306 = vmatpush1.msra.mxu0 0.0
        %307 = vmatprep.subr.mxu0 0.0
        %308 = vmatpush1.msra.mxu0 0.0
        %309 = vmatprep.subr.mxu0 0.0
        %310 = vmatpush1.msra.mxu0 0.0
        %311 = vmatprep.subr.mxu0 0.0
        %312 = vmatpush1.msra.mxu0 0.0
        %313 = vmatprep.subr.mxu0 0.0
        %314 = vmatpush1.msra.mxu0 0.0
        %315 = vmatprep.subr.mxu0 0.0
        %316 = vmatpush1.msra.mxu0 0.0
        %317 = vmatprep.subr.mxu0 0.0
        %318 = vmatpush1.msra.mxu0 0.0
        %319 = vmatprep.subr.mxu0 0.0
        %320 = vmatpush1.msra.mxu0 0.0
        %321 = vmatprep.subr.mxu0 0.0
        %322 = vmatpush1.msra.mxu0 0.0
        %323 = vmatprep.subr.mxu0 0.0
        %324 = vmatpush1.msra.mxu0 0.0
        %325 = vmatprep.subr.mxu0 0.0
        %326 = vmatpush1.msra.mxu0 0.0
        %327 = vmatprep.subr.mxu0 0.0
        %328 = vmatpush1.msra.mxu0 0.0
        %329 = vmatprep.subr.mxu0 0.0
        %330 = vmatpush1.msra.mxu0 0.0
        %331 = vmatprep.subr.mxu0 0.0
        %332 = vmatpush1.msra.mxu0 0.0
        %333 = vmatprep.subr.mxu0 0.0
        %334 = vmatpush1.msra.mxu0 0.0
        %335 = vmatprep.subr.mxu0 0.0
        %336 = vmatpush1.msra.mxu0 0.0
        %337 = vmatprep.mubr.f32.mxu0 0.0
        %338 = vmatmul.mubr.f32.gmra.mrb[0].mxu0 %v250
        %v339 = vpop.f32.mrb[0].mxu0
        %v340 = vadd.f32 0.0, %v339
        %v341 = vpop.f32.mrb[0].mxu0
        %342 = vmatprep.mubr.f32.mxu0 0.0
        %343 = vmatmul.mubr.f32.gmra.mrb[0].mxu0 %v253
        %v344 = vpop.f32.mrb[0].mxu0
        %v345 = vadd.f32 0.0, %v344
        %v346 = vpop.f32.mrb[0].mxu0
        %347 = vmatprep.mubr.f32.mxu0 0.0
        %348 = vmatmul.mubr.f32.gmra.mrb[0].mxu0 %v256
        %v349 = vpop.f32.mrb[0].mxu0
        %v350 = vadd.f32 0.0, %v349
        %v351 = vpop.f32.mrb[0].mxu0
        %352 = vmatprep.mubr.f32.mxu0 0.0
        %353 = vmatmul.mubr.f32.gmra.mrb[0].mxu0 %v259
        %v354 = vpop.f32.mrb[0].mxu0
        %v355 = vadd.f32 0.0, %v354
        %v356 = vpop.f32.mrb[0].mxu0
        %357 = vmatprep.mubr.f32.mxu0 0.0
        %358 = vmatmul.mubr.f32.gmra.mrb[0].mxu0 %v262
        %v359 = vpop.f32.mrb[0].mxu0
        %v360 = vadd.f32 0.0, %v359
        %v361 = vpop.f32.mrb[0].mxu0
        %362 = vmatprep.mubr.f32.mxu0 0.0
        %363 = vmatmul.mubr.f32.gmra.mrb[0].mxu0 %v265
        %v364 = vpop.f32.mrb[0].mxu0
        %v365 = vadd.f32 0.0, %v364
        %v366 = vpop.f32.mrb[0].mxu0
        %367 = vmatprep.mubr.f32.mxu0 0.0
        %368 = vmatmul.mubr.f32.gmra.mrb[0].mxu0 %v268
        %v369 = vpop.f32.mrb[0].mxu0
        %v370 = vadd.f32 0.0, %v369
        %v371 = vpop.f32.mrb[0].mxu0
        %372 = vmatprep.mubr.f32.mxu0 0.0
        %373 = vmatmul.mubr.f32.gmra.mrb[0].mxu0 %v271
        %v374 = vpop.f32.mrb[0].mxu0
        %v375 = vadd.f32 0.0, %v374
        %v376 = vpop.f32.mrb[0].mxu0
        %377 = vdwg.mxu0
        %v378 = vld [vmem:[#allocation2] sm:$0xff]
        %v379 = vld [vmem:[#allocation2 + $0x8] sm:$0xff]
        %v380 = vld [vmem:[#allocation2 + $0x10] sm:$0xff]
        %v381 = vld [vmem:[#allocation2 + $0x18] sm:$0xff]
        %v382 = vld [vmem:[#allocation6] sm:$0xff]
        %v383 = vld [vmem:[#allocation6 + $0x8] sm:$0xff]
        %v384 = vld [vmem:[#allocation6 + $0x10] sm:$0xff]
        %v385 = vld [vmem:[#allocation6 + $0x18] sm:$0xff]
        %vm386 = vcmask 523264
        %v388 = vsel %vm386, %v382, 0
        %v391 = vsel %vm386, %v383, 0
        %v394 = vsel %vm386, %v384, 0
        %v397 = vsel %vm386, %v385, 0
        %399 = vmatprep.subr.mxu0 0.0
        %400 = vmatpush1.msra.mxu0 %v340
        %401 = vmatprep.subr.mxu0 0.0
        %402 = vmatpush1.msra.mxu0 %v345
        %403 = vmatprep.subr.mxu0 0.0
        %404 = vmatpush1.msra.mxu0 %v350
        %405 = vmatprep.subr.mxu0 0.0
        %406 = vmatpush1.msra.mxu0 %v355
        %407 = vmatprep.subr.mxu0 0.0
        %408 = vmatpush1.msra.mxu0 %v360
        %409 = vmatprep.subr.mxu0 0.0
        %410 = vmatpush1.msra.mxu0 %v365
        %411 = vmatprep.subr.mxu0 0.0
        %412 = vmatpush1.msra.mxu0 %v370
        %413 = vmatprep.subr.mxu0 0.0
        %414 = vmatpush1.msra.mxu0 %v375
        %415 = vmatprep.subr.mxu0 0.0
        %416 = vmatpush1.msra.mxu0 0.0
        %417 = vmatprep.subr.mxu0 0.0
        %418 = vmatpush1.msra.mxu0 0.0
        %419 = vmatprep.subr.mxu0 0.0
        %420 = vmatpush1.msra.mxu0 0.0
        %421 = vmatprep.subr.mxu0 0.0
        %422 = vmatpush1.msra.mxu0 0.0
        %423 = vmatprep.subr.mxu0 0.0
        %424 = vmatpush1.msra.mxu0 0.0
        %425 = vmatprep.subr.mxu0 0.0
        %426 = vmatpush1.msra.mxu0 0.0
        %427 = vmatprep.subr.mxu0 0.0
        %428 = vmatpush1.msra.mxu0 0.0
        %429 = vmatprep.subr.mxu0 0.0
        %430 = vmatpush1.msra.mxu0 0.0
        %431 = vmatprep.subr.mxu0 0.0
        %432 = vmatpush1.msra.mxu0 0.0
        %433 = vmatprep.subr.mxu0 0.0
        %434 = vmatpush1.msra.mxu0 0.0
        %435 = vmatprep.subr.mxu0 0.0
        %436 = vmatpush1.msra.mxu0 0.0
        %437 = vmatprep.subr.mxu0 0.0
        %438 = vmatpush1.msra.mxu0 0.0
        %439 = vmatprep.subr.mxu0 0.0
        %440 = vmatpush1.msra.mxu0 0.0
        %441 = vmatprep.subr.mxu0 0.0
        %442 = vmatpush1.msra.mxu0 0.0
        %443 = vmatprep.subr.mxu0 0.0
        %444 = vmatpush1.msra.mxu0 0.0
        %445 = vmatprep.subr.mxu0 0.0
        %446 = vmatpush1.msra.mxu0 0.0
        %447 = vmatprep.subr.mxu0 0.0
        %448 = vmatpush1.msra.mxu0 0.0
        %449 = vmatprep.subr.mxu0 0.0
        %450 = vmatpush1.msra.mxu0 0.0
        %451 = vmatprep.subr.mxu0 0.0
        %452 = vmatpush1.msra.mxu0 0.0
        %453 = vmatprep.subr.mxu0 0.0
        %454 = vmatpush1.msra.mxu0 0.0
        %455 = vmatprep.subr.mxu0 0.0
        %456 = vmatpush1.msra.mxu0 0.0
        %457 = vmatprep.subr.mxu0 0.0
        %458 = vmatpush1.msra.mxu0 0.0
        %459 = vmatprep.subr.mxu0 0.0
        %460 = vmatpush1.msra.mxu0 0.0
        %461 = vmatprep.subr.mxu0 0.0
        %462 = vmatpush1.msra.mxu0 0.0
        %463 = vmatprep.mubr.f32.mxu0 0.0
        %464 = vmatmul.mubr.f32.gmra.mrb[0].mxu0 %v388
        %v465 = vpop.f32.mrb[0].mxu0
        %v466 = vadd.f32 0.0, %v465
        %v467 = vpop.f32.mrb[0].mxu0
        %468 = vmatprep.mubr.f32.mxu0 0.0
        %469 = vmatmul.mubr.f32.gmra.mrb[0].mxu0 %v391
        %v470 = vpop.f32.mrb[0].mxu0
        %v471 = vadd.f32 0.0, %v470
        %v472 = vpop.f32.mrb[0].mxu0
        %473 = vmatprep.mubr.f32.mxu0 0.0
        %474 = vmatmul.mubr.f32.gmra.mrb[0].mxu0 %v394
        %v475 = vpop.f32.mrb[0].mxu0
        %v476 = vadd.f32 0.0, %v475
        %v477 = vpop.f32.mrb[0].mxu0
        %478 = vmatprep.mubr.f32.mxu0 0.0
        %479 = vmatmul.mubr.f32.gmra.mrb[0].mxu0 %v397
        %v480 = vpop.f32.mrb[0].mxu0
        %v481 = vadd.f32 0.0, %v480
        %v482 = vpop.f32.mrb[0].mxu0
        %483 = vdwg.mxu0
        %v484 = vadd.f32 %v378, %v466
        %v485 = vadd.f32 %v379, %v471
        %v486 = vadd.f32 %v380, %v476
        %v487 = vadd.f32 %v381, %v481
        %vm488 = vcmask 64512
        %489 = vst.msk [vmem:[#allocation2] sm:$0xff] %vm488, %v484
        %490 = vst.msk [vmem:[#allocation2 + $0x8] sm:$0xff] %vm488, %v485
        %491 = vst.msk [vmem:[#allocation2 + $0x10] sm:$0xff] %vm488, %v486
        %492 = vst.msk [vmem:[#allocation2 + $0x18] sm:$0xff] %vm488, %v487
        // Predicated region
        $region45: #{tpu_custom_call.1} parent=31 // pred_check
          %p493 = pneg %p229
        $region46: #{tpu_custom_call.1} parent=31 // pred_check_branch
          %495 = sbr.rel (%p493) target = $region48
        $region47: #{tpu_custom_call.1} parent=31 // pred_region
          %v496 = vld [vmem:[#allocation2] sm:$0xff]
          %v497 = vld [vmem:[#allocation2 + $0x8] sm:$0xff]
          %v498 = vld [vmem:[#allocation2 + $0x10] sm:$0xff]
          %v499 = vld [vmem:[#allocation2 + $0x18] sm:$0xff]
          %500 = vst.msk [vmem:[%s227] sm:$0xff] %vm488, %v496
          %501 = vst.msk [vmem:[%s227 + $0x8] sm:$0xff] %vm488, %v497
          %502 = vst.msk [vmem:[%s227 + $0x10] sm:$0xff] %vm488, %v498
          %503 = vst.msk [vmem:[%s227 + $0x18] sm:$0xff] %vm488, %v499
        $region48: #{tpu_custom_call.1} parent=31 // pred_fallthru
          _
        %s504 = sand.u32 %s116, 1
        %s505 = scalar_lea.sflag [#allocation5], %s504
        %s506 = sand.u32 %s116, 1
        %s507 = smul.addr %s506, 32
        %s508 = scalar_lea.vmem [#allocation8], %s507
        // Predicated region
        $region49: #{tpu_custom_call.1} parent=31 // pred_check
          %p509 = pneg %p126
        $region50: #{tpu_custom_call.1} parent=31 // pred_check_branch
          %511 = sbr.rel (%p509) target = $region52
        $region51: #{tpu_custom_call.1} parent=31 // pred_region
          %s513 = ssub.s32 512, 512
          %514 = vsyncadd %s505, %s513
          %s515 = smul.addr %s25, 4
          %s516 = smul.addr %s515, 128
          %s517 = scalar_lea.hbm %s3, %s516
          %s518 = sshll.u32 %s508, 4
          %s519 = int_to_ptr.vmem [resolvable:$true] %s518
          %524 = dma.vmem_to_hbm [thread:$0]  %s519, 512, %s517, %s505, 128, 128, 8
        $region52: #{tpu_custom_call.1} parent=31 // pred_fallthru
          _
      $region32: #{tpu_custom_call.1} parent=5 // pred_fallthru
        _
      %p525 = scmp.le.s32.totalorder 2, %s16
      // Predicated region
      $region53: #{tpu_custom_call.1} parent=5 // pred_check
        %p526 = pneg %p525
      $region54: #{tpu_custom_call.1} parent=5 // pred_check_branch
        %528 = sbr.rel (%p526) target = $region56
      $region55: #{tpu_custom_call.1} parent=5 // pred_region
        %s529 = ssub.s32 %s16, 2
        // Predicated region
        $region57: #{tpu_custom_call.1} parent=55 // pred_check
          %p530 = pneg %p132
        $region58: #{tpu_custom_call.1} parent=55 // pred_check_branch
          %532 = sbr.rel (%p530) target = $region60
        $region59: #{tpu_custom_call.1} parent=55 // pred_region
          %s533 = sand.u32 %s117, 1
          %s534 = scalar_lea.sflag [#allocation5], %s533
          %s535 = sand.u32 %s117, 1
          %s536 = smul.addr %s535, 32
          %s537 = scalar_lea.vmem [#allocation8], %s536
          %538 = dma.done %s534, 512
        $region60: #{tpu_custom_call.1} parent=55 // pred_fallthru
          _
      $region56: #{tpu_custom_call.1} parent=5 // pred_fallthru
        _
    $region6: #{tpu_custom_call.1} parent=1 // loop_footer
      %s20 = sadd.s32 1, %s16
    $region7: #{tpu_custom_call.1} parent=1 // loop_footer_branch
      %15 = sbr.rel target = $region3
    $region8: #{tpu_custom_call.1} parent=1 // loop_exit
      _
    %539 = vsyncpa [#allocation4], 1
    %s540 = scalar_lea.sflag [#allocation4], 1
    %541 = vsyncpa %s540, 1
    %542 = vsyncpa [#allocation7], 1
    %543 = vsyncpa [#allocation5], 1
    %s544 = scalar_lea.sflag [#allocation5], 1
    %545 = vsyncpa %s544, 1

</llo_original>
